<compile_context>
chip_gen: v5e
topology: v5e:2x2
jax: 0.10.0
libtpu: 0.0.40
codegen_flags: <defaults>
</compile_context>

<pallas_src>
import functools

import jax
import jax.numpy as jnp
from jax.experimental import pallas as pl
from jax.experimental.pallas import tpu as pltpu

LEAKY_SLOPE = 0.1
BN_EPS = 1e-5
MIN_GRID_STEPS = 8          # keep both v7x TensorCores busy
MAX_TILE_P = 131072         # hard cap so the VMEM budget stays < v7x physical


def _leaky(x):
    return jnp.where(x > 0, x, LEAKY_SLOPE * x)


# ---------------------------------------------------------------------------
# Kernel A: per-tile partial statistics of h = leaky(conv1(x)).
#   sum_h (C,1) and S_hh = h h^T (C,C).  conv1 and the big pixel contraction
#   run on the MXU; only leaky + (optional) tail masking touch the VALU.
# Every grid step writes its OWN output blocks -> no resident accumulator,
# both grid axes "parallel" (megacore sharding on v7x).
# ---------------------------------------------------------------------------
def stats_kernel(x_ref, w1_ref, b1_ref, shh_ref, sumh_ref, *, p_img, tile_p):
    x = x_ref[0]                                                   # (Cin, T)
    h = jnp.dot(w1_ref[...], x, preferred_element_type=jnp.float32)
    h = _leaky(h + b1_ref[...])                                    # (C, T)
    if p_img % tile_p != 0:
        # Zero the padded tail lanes of the last (partial) pixel tile so they
        # do not contribute to the reductions (where() blocks NaN garbage).
        j = pl.program_id(1)
        col = jax.lax.broadcasted_iota(jnp.int32, h.shape, 1)
        h = jnp.where(j * tile_p + col < p_img, h, 0.0)
    sumh_ref[0] = jnp.sum(h, axis=1, keepdims=True)                # (C, 1)
    # h @ h^T, contracting the (large) pixel/lane axis on the MXU.
    shh_ref[0] = jax.lax.dot_general(
        h, h, dimension_numbers=(((1,), (1,)), ((), ())),
        preferred_element_type=jnp.float32)                        # (C, C)


# ---------------------------------------------------------------------------
# Kernel B: fused conv1 -> leaky -> conv2' -> leaky, with BN already folded
# into conv2's weights/bias.  Output written channel-major (NCHW-compatible).
# ---------------------------------------------------------------------------
def fused_kernel(x_ref, w1_ref, b1_ref, w2_ref, b2_ref, o_ref):
    x = x_ref[0]                                                   # (Cin, T)
    h = jnp.dot(w1_ref[...], x, preferred_element_type=jnp.float32)
    h = _leaky(h + b1_ref[...])                                    # (C, T)
    y = jnp.dot(w2_ref[...], h, preferred_element_type=jnp.float32)
    o_ref[0] = _leaky(y + b2_ref[...]).astype(o_ref.dtype)


def _pick_pixel_tile(p_img, n, tile_cap):
    """Pick a lane-dense pixel tile size (multiple of 128 unless full)."""
    tile_cap = min(int(tile_cap), MAX_TILE_P)
    if p_img <= tile_cap:
        tp = p_img
    else:
        tp = max(128, (tile_cap // 128) * 128)
    # Shrink (down to ~1024 pixels) until the parallel grid has enough steps
    # to shard across v7x's two TensorCores.
    while n * (-(-p_img // tp)) < MIN_GRID_STEPS and tp > 1024:
        tp = max(1024, ((tp // 2) // 128) * 128)
        if tp >= p_img:
            break
    if tp >= p_img:
        tp = p_img
    return tp, -(-p_img // tp)


def input_block_forward(x, params, downsampling_factor, tile_p=65536):
    """x: (N, 3, H, W) float32 NCHW.  Returns (N, C, H_out, W_out) float32."""
    assert downsampling_factor in (1, 2, 4)
    s1 = 2 if downsampling_factor > 1 else 1
    s2 = 2 if downsampling_factor == 4 else 1
    stride = s1 * s2

    w1, b1, w2, b2, gamma, beta = params
    c, cin = w1.shape
    n = x.shape[0]

    # 1x1 strided convs == spatial subsampling (offset 0).
    xs = x[:, :, ::stride, ::stride].astype(jnp.float32)
    h_out, w_out = xs.shape[2], xs.shape[3]
    p_img = h_out * w_out
    xs = xs.reshape(n, cin, p_img)             # free reshape, channel-major

    tp, n_pt = _pick_pixel_tile(p_img, n, tile_p)
    grid = (n, n_pt)

    # VMEM budget for the chosen tile: ~<=20 MiB/step at tp=65536 (x block
    # sublane-padded to (8,tp) f32 double-buffered, (8,tp) output double-
    # buffered, plus intermediates).  32 MiB is safe on all generations
    # (raises v5e's 16 MiB default, == v6e/v7x default, << physical).
    vmem_limit = int(max(32 << 20, 384 * tp))
    cparams = pltpu.CompilerParams(
        dimension_semantics=("parallel", "parallel"),
        vmem_limit_bytes=vmem_limit)

    w1f = w1.astype(jnp.float32)
    w2f = w2.astype(jnp.float32)
    b1c = b1.reshape(c, 1).astype(jnp.float32)
    b2f = b2.astype(jnp.float32)

    x_spec = pl.BlockSpec((1, cin, tp), lambda i, j: (i, 0, j))
    w1_spec = pl.BlockSpec((c, cin), lambda i, j: (0, 0))
    b_spec = pl.BlockSpec((c, 1), lambda i, j: (0, 0))
    w2_spec = pl.BlockSpec((c, c), lambda i, j: (0, 0))
    tile_idx = lambda i, j: (i * n_pt + j, 0, 0)

    # ---- Pass A: per-tile partial statistics of h (pre-conv2) --------------
    shh_tiles, sumh_tiles = pl.pallas_call(
        functools.partial(stats_kernel, p_img=p_img, tile_p=tp),
        out_shape=(
            jax.ShapeDtypeStruct((n * n_pt, c, c), jnp.float32),
            jax.ShapeDtypeStruct((n * n_pt, c, 1), jnp.float32),
        ),
        grid_spec=pltpu.PrefetchScalarGridSpec(
            num_scalar_prefetch=0,
            grid=grid,
            in_specs=[x_spec, w1_spec, b_spec],
            out_specs=[
                pl.BlockSpec((1, c, c), tile_idx),
                pl.BlockSpec((1, c, 1), tile_idx),
            ],
        ),
        compiler_params=cparams,
    )(xs, w1f, b1c)

    # ---- Finalize BN statistics (tiny C x C math in plain JAX) -------------
    count = jnp.float32(n * p_img)
    sum_h = jnp.sum(sumh_tiles[:, :, 0], axis=0)                  # (C,)
    s_hh = jnp.sum(shh_tiles, axis=0)                             # (C, C)
    w2_sum_h = w2f @ sum_h                                        # (C,)
    mean = w2_sum_h / count + b2f
    e_y2 = (jnp.sum((w2f @ s_hh) * w2f, axis=1)                   # diag(W2 S W2^T)
            + 2.0 * b2f * w2_sum_h) / count + b2f * b2f
    var = e_y2 - mean * mean                                      # biased (training BN)
    scale = gamma.astype(jnp.float32) * jax.lax.rsqrt(var + BN_EPS)
    shift = beta.astype(jnp.float32) - mean * scale

    # Fold BN into conv2:  BN(W2 h + b2) = (scale*W2) h + (scale*b2 + shift).
    w2p = scale[:, None] * w2f
    b2p = (scale * b2f + shift).reshape(c, 1)

    # ---- Pass B: fused conv1 -> leaky -> conv2' -> leaky, channel-major ----
    out_flat = pl.pallas_call(
        fused_kernel,
        out_shape=jax.ShapeDtypeStruct((n, c, p_img), jnp.float32),
        grid_spec=pltpu.PrefetchScalarGridSpec(
            num_scalar_prefetch=0,
            grid=grid,
            in_specs=[x_spec, w1_spec, b_spec, w2_spec, b_spec],
            out_specs=pl.BlockSpec((1, c, tp), lambda i, j: (i, 0, j)),
        ),
        compiler_params=cparams,
    )(xs, w1f, b1c, w2p, b2p)

    return out_flat.reshape(n, c, h_out, w_out)   # free reshape: already NCHW


# ---------------------------------------------------------------------------
# Pure-JAX reference (mirrors the PyTorch forward) for correctness checks.
# ---------------------------------------------------------------------------
def reference_forward(x, params, downsampling_factor):
    s1 = 2 if downsampling_factor > 1 else 1
    s2 = 2 if downsampling_factor == 4 else 1
    w1, b1, w2, b2, gamma, beta = params
    h = jnp.einsum("nchw,dc->ndhw", x[:, :, ::s1, ::s1], w1) + b1[None, :, None, None]
    h = _leaky(h)
    y = jnp.einsum("nchw,dc->ndhw", h[:, :, ::s2, ::s2], w2) + b2[None, :, None, None]
    mean = jnp.mean(y, axis=(0, 2, 3), keepdims=True)
    var = jnp.mean((y - mean) ** 2, axis=(0, 2, 3), keepdims=True)
    yn = (y - mean) * jax.lax.rsqrt(var + BN_EPS) * gamma[None, :, None, None] \
        + beta[None, :, None, None]
    return _leaky(yn)


if __name__ == "__main__":
    cin, c = 3, 8
    key = jax.random.PRNGKey(0)
    kx1, kx2, kx3, k1, kb1, k2, kb2 = jax.random.split(key, 7)

    # Conv weights stored in PyTorch (out_channels, in_channels) layout.
    w1 = 0.5 * jax.random.normal(k1, (c, cin), dtype=jnp.float32)
    b1 = 0.1 * jax.random.normal(kb1, (c,), dtype=jnp.float32)
    w2 = 0.5 * jax.random.normal(k2, (c, c), dtype=jnp.float32)
    b2 = 0.1 * jax.random.normal(kb2, (c,), dtype=jnp.float32)
    gamma = 1.0 + 0.1 * jnp.arange(c, dtype=jnp.float32)
    beta = 0.05 * jnp.arange(c, dtype=jnp.float32)
    params = (w1, b1, w2, b2, gamma, beta)

    # Case 1: downsampling_factor=4, 16x16 input -> one 16-pixel tile / image.
    x1 = jax.random.normal(kx1, (2, cin, 16, 16), dtype=jnp.float32)
    fwd1 = jax.jit(functools.partial(input_block_forward, downsampling_factor=4))
    out1 = fwd1(x1, params)
    jax.block_until_ready(out1)
    ref1 = reference_forward(x1, params, 4)
    assert out1.shape == ref1.shape, (out1.shape, ref1.shape)
    assert jnp.allclose(out1, ref1, atol=1e-4, rtol=1e-4), "case 1 mismatch"

    # Case 2: downsampling_factor=1, 32x32 input, forced small tile -> 4 pixel
    # tiles per image (exact division), exercising the per-tile stats path.
    x2 = jax.random.normal(kx2, (2, cin, 32, 32), dtype=jnp.float32)
    fwd2 = jax.jit(functools.partial(input_block_forward,
                                     downsampling_factor=1, tile_p=256))
    out2 = fwd2(x2, params)
    jax.block_until_ready(out2)
    ref2 = reference_forward(x2, params, 1)
    assert out2.shape == ref2.shape, (out2.shape, ref2.shape)
    assert jnp.allclose(out2, ref2, atol=1e-4, rtol=1e-4), "case 2 mismatch"

    # Case 3: downsampling_factor=2, 26x26 input, forced tile of 128 ->
    # p_img=169 with a 41-lane partial tail tile (tests pass-A masking and
    # pass-B edge-block output clipping).
    x3 = jax.random.normal(kx3, (2, cin, 26, 26), dtype=jnp.float32)
    fwd3 = jax.jit(functools.partial(input_block_forward,
                                     downsampling_factor=2, tile_p=128))
    out3 = fwd3(x3, params)
    jax.block_until_ready(out3)
    ref3 = reference_forward(x3, params, 2)
    assert out3.shape == ref3.shape, (out3.shape, ref3.shape)
    assert jnp.allclose(out3, ref3, atol=1e-4, rtol=1e-4), "case 3 mismatch"

    print("KERNEL_OK")
</pallas_src>

<mosaic_0001>
module attributes {stable_mosaic.version = 11 : i64} {
  func.func @stats_kernel(%arg0: i32, %arg1: i32, %arg2: memref<1x3x16xf32, #tpu.memory_space<vmem>>, %arg3: memref<8x3xf32, #tpu.memory_space<vmem>>, %arg4: memref<8x1xf32, #tpu.memory_space<vmem>>, %arg5: memref<1x8x8xf32, #tpu.memory_space<vmem>>, %arg6: memref<1x8x1xf32, #tpu.memory_space<vmem>>) attributes {dimension_semantics = [#tpu.dimension_semantics<parallel>, #tpu.dimension_semantics<parallel>], iteration_bounds = array<i64: 2, 1>, scalar_prefetch = 0 : i64, scratch_operands = 0 : i64, tpu.core_type = #tpu.core_type<tc>, window_params = [{transform_indices = @transform_0, window_bounds = array<i64: 1, 3, 16>}, {pipeline_mode = #tpu.pipeline_mode<synchronous>, transform_indices = @transform_1, window_bounds = array<i64: 8, 3>}, {pipeline_mode = #tpu.pipeline_mode<synchronous>, transform_indices = @transform_2, window_bounds = array<i64: 8, 1>}, {transform_indices = @transform_3, window_bounds = array<i64: 1, 8, 8>}, {transform_indices = @transform_4, window_bounds = array<i64: 1, 8, 1>}]} {
    %c0 = arith.constant 0 : index
    %c0_0 = arith.constant 0 : index
    %c0_1 = arith.constant 0 : index
    %0 = vector.load %arg2[%c0, %c0_0, %c0_1] : memref<1x3x16xf32, #tpu.memory_space<vmem>>, vector<1x3x16xf32>
    %1 = vector.shape_cast %0 : vector<1x3x16xf32> to vector<3x16xf32>
    %c0_2 = arith.constant 0 : index
    %c0_3 = arith.constant 0 : index
    %2 = vector.load %arg3[%c0_2, %c0_3] : memref<8x3xf32, #tpu.memory_space<vmem>>, vector<8x3xf32>
    %cst = arith.constant dense<0.000000e+00> : vector<8x16xf32>
    %3 = tpu.matmul %2, %1, %cst {dimension_numbers = #tpu.dot_dimension_numbers<[1], [0], [0], [1], [0, 0, 1, 1], [], []>} : vector<8x3xf32>, vector<3x16xf32>, vector<8x16xf32> -> vector<8x16xf32>
    %c0_4 = arith.constant 0 : index
    %c0_5 = arith.constant 0 : index
    %4 = vector.load %arg4[%c0_4, %c0_5] : memref<8x1xf32, #tpu.memory_space<vmem>>, vector<8x1xf32>
    %5 = vector.broadcast %4 : vector<8x1xf32> to vector<8x16xf32>
    %6 = arith.addf %3, %5 : vector<8x16xf32>
    %cst_6 = arith.constant 0.000000e+00 : f32
    %7 = vector.broadcast %cst_6 : f32 to vector<8x16xf32>
    %8 = arith.cmpf ogt, %6, %7 : vector<8x16xf32>
    %cst_7 = arith.constant 1.000000e-01 : f32
    %9 = vector.broadcast %cst_7 : f32 to vector<8x16xf32>
    %10 = arith.mulf %9, %6 : vector<8x16xf32>
    %11 = arith.select %8, %6, %10 : vector<8x16xi1>, vector<8x16xf32>
    %cst_8 = arith.constant dense<0.000000e+00> : vector<8xf32>
    %12 = vector.multi_reduction <add>, %11, %cst_8 [1] : vector<8x16xf32> to vector<8xf32>
    %13 = vector.shape_cast %12 : vector<8xf32> to vector<8x1xf32>
    %c0_9 = arith.constant 0 : index
    %c0_10 = arith.constant 0 : index
    %c0_11 = arith.constant 0 : index
    %14 = vector.load %arg6[%c0_9, %c0_10, %c0_11] : memref<1x8x1xf32, #tpu.memory_space<vmem>>, vector<1x8x1xf32>
    %15 = vector.shape_cast %14 : vector<1x8x1xf32> to vector<8x1xf32>
    %16 = vector.shape_cast %13 : vector<8x1xf32> to vector<1x8x1xf32>
    tpu.vector_store %arg6[%c0_9, %c0_10, %c0_11], %16 {strides = array<i32>} : memref<1x8x1xf32, #tpu.memory_space<vmem>>, vector<1x8x1xf32>,
    %cst_12 = arith.constant dense<0.000000e+00> : vector<8x8xf32>
    %17 = tpu.matmul %11, %11, %cst_12 {dimension_numbers = #tpu.dot_dimension_numbers<[1], [1], [0], [0], [0, 0, 1, 0], [], []>} : vector<8x16xf32>, vector<8x16xf32>, vector<8x8xf32> -> vector<8x8xf32>
    %c0_13 = arith.constant 0 : index
    %c0_14 = arith.constant 0 : index
    %c0_15 = arith.constant 0 : index
    %18 = vector.load %arg5[%c0_13, %c0_14, %c0_15] : memref<1x8x8xf32, #tpu.memory_space<vmem>>, vector<1x8x8xf32>
    %19 = vector.shape_cast %18 : vector<1x8x8xf32> to vector<8x8xf32>
    %20 = vector.shape_cast %17 : vector<8x8xf32> to vector<1x8x8xf32>
    tpu.vector_store %arg5[%c0_13, %c0_14, %c0_15], %20 {strides = array<i32>} : memref<1x8x8xf32, #tpu.memory_space<vmem>>, vector<1x8x8xf32>,
    return
  }
  func.func @transform_0(%arg0: i32, %arg1: i32) -> (i32, i32, i32) {
    %c0_i32 = arith.constant 0 : i32
    %c0_i32_0 = arith.constant 0 : i32
    return %arg0, %c0_i32, %arg1 : i32, i32, i32
  }
  func.func @transform_1(%arg0: i32, %arg1: i32) -> (i32, i32) {
    %c0_i32 = arith.constant 0 : i32
    %c0_i32_0 = arith.constant 0 : i32
    %c0_i32_1 = arith.constant 0 : i32
    return %c0_i32, %c0_i32_0 : i32, i32
  }
  func.func @transform_2(%arg0: i32, %arg1: i32) -> (i32, i32) {
    %c0_i32 = arith.constant 0 : i32
    %c0_i32_0 = arith.constant 0 : i32
    %c0_i32_1 = arith.constant 0 : i32
    return %c0_i32, %c0_i32_0 : i32, i32
  }
  func.func @transform_3(%arg0: i32, %arg1: i32) -> (i32, i32, i32) {
    %c1_i32 = arith.constant 1 : i32
    %0 = arith.muli %arg0, %c1_i32 : i32
    %1 = arith.addi %0, %arg1 : i32
    %c0_i32 = arith.constant 0 : i32
    %c0_i32_0 = arith.constant 0 : i32
    %c0_i32_1 = arith.constant 0 : i32
    return %1, %c0_i32, %c0_i32_0 : i32, i32, i32
  }
  func.func @transform_4(%arg0: i32, %arg1: i32) -> (i32, i32, i32) {
    %c1_i32 = arith.constant 1 : i32
    %0 = arith.muli %arg0, %c1_i32 : i32
    %1 = arith.addi %0, %arg1 : i32
    %c0_i32 = arith.constant 0 : i32
    %c0_i32_0 = arith.constant 0 : i32
    %c0_i32_1 = arith.constant 0 : i32
    return %1, %c0_i32, %c0_i32_0 : i32, i32, i32
  }
}

module attributes {stable_mosaic.version = 11 : i64} {
  func.func @fused_kernel(%arg0: i32, %arg1: i32, %arg2: memref<1x3x16xf32, #tpu.memory_space<vmem>>, %arg3: memref<8x3xf32, #tpu.memory_space<vmem>>, %arg4: memref<8x1xf32, #tpu.memory_space<vmem>>, %arg5: memref<8x8xf32, #tpu.memory_space<vmem>>, %arg6: memref<8x1xf32, #tpu.memory_space<vmem>>, %arg7: memref<1x8x16xf32, #tpu.memory_space<vmem>>) attributes {dimension_semantics = [#tpu.dimension_semantics<parallel>, #tpu.dimension_semantics<parallel>], iteration_bounds = array<i64: 2, 1>, scalar_prefetch = 0 : i64, scratch_operands = 0 : i64, tpu.core_type = #tpu.core_type<tc>, window_params = [{transform_indices = @transform_0, window_bounds = array<i64: 1, 3, 16>}, {pipeline_mode = #tpu.pipeline_mode<synchronous>, transform_indices = @transform_1, window_bounds = array<i64: 8, 3>}, {pipeline_mode = #tpu.pipeline_mode<synchronous>, transform_indices = @transform_2, window_bounds = array<i64: 8, 1>}, {pipeline_mode = #tpu.pipeline_mode<synchronous>, transform_indices = @transform_3, window_bounds = array<i64: 8, 8>}, {pipeline_mode = #tpu.pipeline_mode<synchronous>, transform_indices = @transform_4, window_bounds = array<i64: 8, 1>}, {transform_indices = @transform_5, window_bounds = array<i64: 1, 8, 16>}]} {
    %c0 = arith.constant 0 : index
    %c0_0 = arith.constant 0 : index
    %c0_1 = arith.constant 0 : index
    %0 = vector.load %arg2[%c0, %c0_0, %c0_1] : memref<1x3x16xf32, #tpu.memory_space<vmem>>, vector<1x3x16xf32>
    %1 = vector.shape_cast %0 : vector<1x3x16xf32> to vector<3x16xf32>
    %c0_2 = arith.constant 0 : index
    %c0_3 = arith.constant 0 : index
    %2 = vector.load %arg3[%c0_2, %c0_3] : memref<8x3xf32, #tpu.memory_space<vmem>>, vector<8x3xf32>
    %cst = arith.constant dense<0.000000e+00> : vector<8x16xf32>
    %3 = tpu.matmul %2, %1, %cst {dimension_numbers = #tpu.dot_dimension_numbers<[1], [0], [0], [1], [0, 0, 1, 1], [], []>} : vector<8x3xf32>, vector<3x16xf32>, vector<8x16xf32> -> vector<8x16xf32>
    %c0_4 = arith.constant 0 : index
    %c0_5 = arith.constant 0 : index
    %4 = vector.load %arg4[%c0_4, %c0_5] : memref<8x1xf32, #tpu.memory_space<vmem>>, vector<8x1xf32>
    %5 = vector.broadcast %4 : vector<8x1xf32> to vector<8x16xf32>
    %6 = arith.addf %3, %5 : vector<8x16xf32>
    %cst_6 = arith.constant 0.000000e+00 : f32
    %7 = vector.broadcast %cst_6 : f32 to vector<8x16xf32>
    %8 = arith.cmpf ogt, %6, %7 : vector<8x16xf32>
    %cst_7 = arith.constant 1.000000e-01 : f32
    %9 = vector.broadcast %cst_7 : f32 to vector<8x16xf32>
    %10 = arith.mulf %9, %6 : vector<8x16xf32>
    %11 = arith.select %8, %6, %10 : vector<8x16xi1>, vector<8x16xf32>
    %c0_8 = arith.constant 0 : index
    %c0_9 = arith.constant 0 : index
    %12 = vector.load %arg5[%c0_8, %c0_9] : memref<8x8xf32, #tpu.memory_space<vmem>>, vector<8x8xf32>
    %cst_10 = arith.constant dense<0.000000e+00> : vector<8x16xf32>
    %13 = tpu.matmul %12, %11, %cst_10 {dimension_numbers = #tpu.dot_dimension_numbers<[1], [0], [0], [1], [0, 0, 1, 1], [], []>} : vector<8x8xf32>, vector<8x16xf32>, vector<8x16xf32> -> vector<8x16xf32>
    %c0_11 = arith.constant 0 : index
    %c0_12 = arith.constant 0 : index
    %14 = vector.load %arg6[%c0_11, %c0_12] : memref<8x1xf32, #tpu.memory_space<vmem>>, vector<8x1xf32>
    %15 = vector.broadcast %14 : vector<8x1xf32> to vector<8x16xf32>
    %16 = arith.addf %13, %15 : vector<8x16xf32>
    %cst_13 = arith.constant 0.000000e+00 : f32
    %17 = vector.broadcast %cst_13 : f32 to vector<8x16xf32>
    %18 = arith.cmpf ogt, %16, %17 : vector<8x16xf32>
    %cst_14 = arith.constant 1.000000e-01 : f32
    %19 = vector.broadcast %cst_14 : f32 to vector<8x16xf32>
    %20 = arith.mulf %19, %16 : vector<8x16xf32>
    %21 = arith.select %18, %16, %20 : vector<8x16xi1>, vector<8x16xf32>
    %c0_15 = arith.constant 0 : index
    %c0_16 = arith.constant 0 : index
    %c0_17 = arith.constant 0 : index
    %22 = vector.load %arg7[%c0_15, %c0_16, %c0_17] : memref<1x8x16xf32, #tpu.memory_space<vmem>>, vector<1x8x16xf32>
    %23 = vector.shape_cast %22 : vector<1x8x16xf32> to vector<8x16xf32>
    %24 = vector.shape_cast %21 : vector<8x16xf32> to vector<1x8x16xf32>
    tpu.vector_store %arg7[%c0_15, %c0_16, %c0_17], %24 {strides = array<i32>} : memref<1x8x16xf32, #tpu.memory_space<vmem>>, vector<1x8x16xf32>,
    return
  }
  func.func @transform_0(%arg0: i32, %arg1: i32) -> (i32, i32, i32) {
    %c0_i32 = arith.constant 0 : i32
    %c0_i32_0 = arith.constant 0 : i32
    return %arg0, %c0_i32, %arg1 : i32, i32, i32
  }
  func.func @transform_1(%arg0: i32, %arg1: i32) -> (i32, i32) {
    %c0_i32 = arith.constant 0 : i32
    %c0_i32_0 = arith.constant 0 : i32
    %c0_i32_1 = arith.constant 0 : i32
    return %c0_i32, %c0_i32_0 : i32, i32
  }
  func.func @transform_2(%arg0: i32, %arg1: i32) -> (i32, i32) {
    %c0_i32 = arith.constant 0 : i32
    %c0_i32_0 = arith.constant 0 : i32
    %c0_i32_1 = arith.constant 0 : i32
    return %c0_i32, %c0_i32_0 : i32, i32
  }
  func.func @transform_3(%arg0: i32, %arg1: i32) -> (i32, i32) {
    %c0_i32 = arith.constant 0 : i32
    %c0_i32_0 = arith.constant 0 : i32
    %c0_i32_1 = arith.constant 0 : i32
    return %c0_i32, %c0_i32_0 : i32, i32
  }
  func.func @transform_4(%arg0: i32, %arg1: i32) -> (i32, i32) {
    %c0_i32 = arith.constant 0 : i32
    %c0_i32_0 = arith.constant 0 : i32
    %c0_i32_1 = arith.constant 0 : i32
    return %c0_i32, %c0_i32_0 : i32, i32
  }
  func.func @transform_5(%arg0: i32, %arg1: i32) -> (i32, i32, i32) {
    %c0_i32 = arith.constant 0 : i32
    %c0_i32_0 = arith.constant 0 : i32
    return %arg0, %c0_i32, %arg1 : i32, i32, i32
  }
}

</mosaic_0001>

<llo_original>
// kernel: input_block_forward.2
$region0: #{input_block_forward.2}
  #allocation0 [shape = 'u32[]', space=smem, size = 0x4, offset = 0x4, fixed_abs, tag = 'smem constant byte address 0x4 - core index']
  #allocation1 [shape = 'u32[72,128]{1,0:T(1,128)}', space=vmem, size = 0x9000, scoped, tag = 'internal scratch']
  %s0 = inlined_call_operand.vmem [shape: f32[2,3,16], index: 0, kind: input, shape index: {}]
  %s1 = inlined_call_operand.vmem [shape: f32[8,3], index: 1, kind: input, shape index: {}]
  %s2 = inlined_call_operand.vmem [shape: f32[8,1], index: 2, kind: input, shape index: {}]
  %s3 = inlined_call_operand.vmem [shape: f32[2,8,8], index: 3, kind: output, shape index: {0}]
  %s4 = inlined_call_operand.vmem [shape: f32[2,8,1], index: 4, kind: output, shape index: {1}]
  %5 = xla_tuple %s3, %s4
  %s6 = sld [smem:[#allocation0]]
  $region53: #{input_block_forward.2} parent=0
    _
  %s8 = ssub.s32 1, %s6
  %s9 = scalar_select 0, %s8, %s6
  loop: start=0, step=1, limit=4
  $region2: #{input_block_forward.2} parent=0 // loop_pre_header
    _
  $region3: #{input_block_forward.2} parent=0 // loop_header
    %s11 = sphi 0, %s15
    %p12 = scmp.ge.s32.totalorder %s11, 4
    %s18 = sphi 0, %s30
    %s19 = sphi 0, %s26
    %s20 = sphi 0, %s18
    %s21 = sphi 0, %s19
    %s22 = sphi 0, %s20
    %s23 = sphi 0, %s21
    %s35 = sphi 0, %s37
    %s38 = sphi 0, %s35
    %s39 = sphi 0, %s38
    %s55 = sphi 0, %s39
    %s59 = sphi 0, %s59
    %s61 = sphi 0, %s59
    %s62 = sphi 0, %s61
    %s76 = sphi 0, %s62
    %s80 = sphi 0, %s80
    %s82 = sphi 0, %s80
    %s83 = sphi 0, %s82
    %s97 = sphi 0, %s83
    %s105 = sphi 0, %s107
    %s108 = sphi 0, %s105
    %s109 = sphi 0, %s108
    %s125 = sphi 0, %s109
    %s133 = sphi 0, %s135
    %s136 = sphi 0, %s133
    %s137 = sphi 0, %s136
    %s153 = sphi 0, %s137
  $region4: #{input_block_forward.2} parent=0 // loop_header_branch
    %14 = sbr.rel (%p12) target = $region8
  $region5: #{input_block_forward.2} parent=0 // loop_body
    %s16 = ssub.s32 %s11, 1
    %s17 = ssub.s32 %s11, 2
    %s24 = sadd.s32 1, %s19
    %p25 = scmp.ge.s32.totalorder %s24, 1
    %s26 = scalar_select %p25, 0, %s24
    %s27 = sadd.s32 1, %s18
    %s28 = scalar_select %p25, %s27, %s18
    %p29 = scmp.ge.s32.totalorder %s28, 2
    %s30 = scalar_select %p29, 0, %s28
    %s31 = ssub.s32 %s18, %s30
    %s32 = ssub.s32 %s19, %s26
    %s33 = sor.u32 %s31, %s32
    %p34 = scmp.eq.s32.totalorder %s33, 0
    %s36 = sadd.s32 %s35, 1
    %s37 = scalar_select %p34, %s35, %s36
    %p40 = pneg %p34
    %p41 = scmp.eq.s32.totalorder %s11, 1
    %p42 = por %p40, %p41
    %p43 = scmp.ne.s32.totalorder %s35, %s38
    %p44 = scmp.eq.s32.totalorder %s11, 0
    %p45 = por %p43, %p44
    %p46 = scmp.ne.s32.totalorder %s35, %s38
    %p47 = scmp.eq.s32.totalorder %s16, 1
    %p48 = por %p46, %p47
    %p49 = scmp.ne.s32.totalorder %s38, %s39
    %p50 = scmp.eq.s32.totalorder %s16, 0
    %p51 = por %p49, %p50
    %p52 = scmp.ne.s32.totalorder %s38, %s39
    %p53 = scmp.eq.s32.totalorder %s17, 1
    %p54 = por %p52, %p53
    %p56 = scmp.ne.s32.totalorder %s39, %s55
    %p57 = scmp.eq.s32.totalorder %s17, 0
    %p58 = por %p56, %p57
    %s60 = sadd.s32 %s59, 1
    %p63 = scmp.eq.s32.totalorder %s11, 1
    %p64 = scmp.ne.s32.totalorder %s59, %s61
    %p65 = scmp.eq.s32.totalorder %s11, 0
    %p66 = por %p64, %p65
    %p67 = scmp.ne.s32.totalorder %s59, %s61
    %p68 = scmp.eq.s32.totalorder %s16, 1
    %p69 = por %p67, %p68
    %p70 = scmp.ne.s32.totalorder %s61, %s62
    %p71 = scmp.eq.s32.totalorder %s16, 0
    %p72 = por %p70, %p71
    %p73 = scmp.ne.s32.totalorder %s61, %s62
    %p74 = scmp.eq.s32.totalorder %s17, 1
    %p75 = por %p73, %p74
    %p77 = scmp.ne.s32.totalorder %s62, %s76
    %p78 = scmp.eq.s32.totalorder %s17, 0
    %p79 = por %p77, %p78
    %s81 = sadd.s32 %s80, 1
    %p84 = scmp.eq.s32.totalorder %s11, 1
    %p85 = scmp.ne.s32.totalorder %s80, %s82
    %p86 = scmp.eq.s32.totalorder %s11, 0
    %p87 = por %p85, %p86
    %p88 = scmp.ne.s32.totalorder %s80, %s82
    %p89 = scmp.eq.s32.totalorder %s16, 1
    %p90 = por %p88, %p89
    %p91 = scmp.ne.s32.totalorder %s82, %s83
    %p92 = scmp.eq.s32.totalorder %s16, 0
    %p93 = por %p91, %p92
    %p94 = scmp.ne.s32.totalorder %s82, %s83
    %p95 = scmp.eq.s32.totalorder %s17, 1
    %p96 = por %p94, %p95
    %p98 = scmp.ne.s32.totalorder %s83, %s97
    %p99 = scmp.eq.s32.totalorder %s17, 0
    %p100 = por %p98, %p99
    %s101 = sadd.s32 %s18, %s19
    %s102 = sadd.s32 %s30, %s26
    %s103 = ssub.s32 %s101, %s102
    %p104 = scmp.eq.s32.totalorder %s103, 0
    %s106 = sadd.s32 %s105, 1
    %s107 = scalar_select %p104, %s105, %s106
    %p110 = pneg %p104
    %p111 = scmp.eq.s32.totalorder %s11, 1
    %p112 = por %p110, %p111
    %p113 = scmp.ne.s32.totalorder %s105, %s108
    %p114 = scmp.eq.s32.totalorder %s11, 0
    %p115 = por %p113, %p114
    %p116 = scmp.ne.s32.totalorder %s105, %s108
    %p117 = scmp.eq.s32.totalorder %s16, 1
    %p118 = por %p116, %p117
    %p119 = scmp.ne.s32.totalorder %s108, %s109
    %p120 = scmp.eq.s32.totalorder %s16, 0
    %p121 = por %p119, %p120
    %p122 = scmp.ne.s32.totalorder %s108, %s109
    %p123 = scmp.eq.s32.totalorder %s17, 1
    %p124 = por %p122, %p123
    %p126 = scmp.ne.s32.totalorder %s109, %s125
    %p127 = scmp.eq.s32.totalorder %s17, 0
    %p128 = por %p126, %p127
    %s129 = sadd.s32 %s18, %s19
    %s130 = sadd.s32 %s30, %s26
    %s131 = ssub.s32 %s129, %s130
    %p132 = scmp.eq.s32.totalorder %s131, 0
    %s134 = sadd.s32 %s133, 1
    %s135 = scalar_select %p132, %s133, %s134
    %p138 = pneg %p132
    %p139 = scmp.eq.s32.totalorder %s11, 1
    %p140 = por %p138, %p139
    %p141 = scmp.ne.s32.totalorder %s133, %s136
    %p142 = scmp.eq.s32.totalorder %s11, 0
    %p143 = por %p141, %p142
    %p144 = scmp.ne.s32.totalorder %s133, %s136
    %p145 = scmp.eq.s32.totalorder %s16, 1
    %p146 = por %p144, %p145
    %p147 = scmp.ne.s32.totalorder %s136, %s137
    %p148 = scmp.eq.s32.totalorder %s16, 0
    %p149 = por %p147, %p148
    %p150 = scmp.ne.s32.totalorder %s136, %s137
    %p151 = scmp.eq.s32.totalorder %s17, 1
    %p152 = por %p150, %p151
    %p154 = scmp.ne.s32.totalorder %s137, %s153
    %p155 = scmp.eq.s32.totalorder %s17, 0
    %p156 = por %p154, %p155
    %p157 = scmp.le.s32.totalorder 1, %s11
    %p158 = scmp.lt.s32.totalorder %s11, 3
    %p159 = pnand %p157, %p158
    %p160 = pneg %p159
    // Predicated region
    $region9: #{input_block_forward.2} parent=5 // pred_check
      _
    $region10: #{input_block_forward.2} parent=5 // pred_check_branch
      %162 = sbr.rel (%p159) target = $region12
    $region11: #{input_block_forward.2} parent=5 // pred_region
      %s163 = ssub.s32 %s11, 1
      // Predicated region
      $region13: #{input_block_forward.2} parent=11 // pred_check
        %p164 = pneg %p72
      $region14: #{input_block_forward.2} parent=11 // pred_check_branch
        %166 = sbr.rel (%p164) target = $region16
      $region15: #{input_block_forward.2} parent=11 // pred_region
        _
      $region16: #{input_block_forward.2} parent=11 // pred_fallthru
        _
      // Predicated region
      $region17: #{input_block_forward.2} parent=11 // pred_check
        %p167 = pneg %p93
      $region18: #{input_block_forward.2} parent=11 // pred_check_branch
        %169 = sbr.rel (%p167) target = $region20
      $region19: #{input_block_forward.2} parent=11 // pred_region
        _
      $region20: #{input_block_forward.2} parent=11 // pred_fallthru
        _
    $region12: #{input_block_forward.2} parent=5 // pred_fallthru
      _
    %p170 = scmp.lt.s32.totalorder %s11, 2
    // Predicated region
    $region21: #{input_block_forward.2} parent=5 // pred_check
      %p171 = pneg %p170
    $region22: #{input_block_forward.2} parent=5 // pred_check_branch
      %173 = sbr.rel (%p171) target = $region24
    $region23: #{input_block_forward.2} parent=5 // pred_region
      // Predicated region
      $region25: #{input_block_forward.2} parent=23 // pred_check
        %p174 = pneg %p45
      $region26: #{input_block_forward.2} parent=23 // pred_check_branch
        %176 = sbr.rel (%p174) target = $region28
      $region27: #{input_block_forward.2} parent=23 // pred_region
        %p177 = scmp.lt.s32.totalorder %s18, 1
        %s178 = scalar_select %p177, %s18, 1
        %p179 = scmp.lt.s32.totalorder %s19, 0
        %s180 = scalar_select %p179, %s19, 0
        %s181 = sadd.s32 %s180, %s178
        %s182 = smul.addr %s181, 4
        %s183 = scalar_lea.vmem %s0, %s182
      $region28: #{input_block_forward.2} parent=23 // pred_fallthru
        _
    $region24: #{input_block_forward.2} parent=5 // pred_fallthru
      _
    %p184 = scmp.le.s32.totalorder 1, %s11
    %p185 = scmp.lt.s32.totalorder %s11, 3
    %p186 = pnand %p184, %p185
    %p187 = pneg %p186
    // Predicated region
    $region29: #{input_block_forward.2} parent=5 // pred_check
      _
    $region30: #{input_block_forward.2} parent=5 // pred_check_branch
      %189 = sbr.rel (%p186) target = $region32
    $region31: #{input_block_forward.2} parent=5 // pred_region
      %s190 = ssub.s32 %s11, 1
      %p191 = scmp.lt.s32.totalorder %s20, 1
      %s192 = scalar_select %p191, %s20, 1
      %p193 = scmp.lt.s32.totalorder %s21, 0
      %s194 = scalar_select %p193, %s21, 0
      %s195 = sadd.s32 %s194, %s192
      %s196 = smul.addr %s195, 4
      %s197 = scalar_lea.vmem %s0, %s196
      %p198 = pneg %p51
      %p199 = pneg %p48
      %p200 = pneg %p72
      %p201 = pneg %p69
      %p202 = pneg %p93
      %p203 = pneg %p90
      %p204 = pneg %p121
      %p205 = pneg %p118
      %s206 = sadd.s32 %s20, %s21
      %p207 = scmp.lt.s32.totalorder %s206, 1
      %s208 = scalar_select %p207, %s206, 1
      %s209 = smul.addr %s208, 8
      %s210 = scalar_lea.vmem %s3, %s209
      %p211 = pneg %p149
      %p212 = pneg %p146
      %s213 = sadd.s32 %s20, %s21
      %p214 = scmp.lt.s32.totalorder %s213, 1
      %s215 = scalar_select %p214, %s213, 1
      %s216 = smul.addr %s215, 8
      %s217 = scalar_lea.vmem %s4, %s216
      %p218 = scmp.lt.s32.totalorder %s20, 1
      %s219 = scalar_select %p218, %s20, 1
      %p220 = scmp.lt.s32.totalorder %s21, 0
      %s221 = scalar_select %p220, %s21, 0
      %s222 = sadd.s32 %s221, %s219
      %s223 = smul.addr %s222, 4
      %s224 = scalar_lea.vmem %s0, %s223
      %s225 = sadd.s32 %s20, %s21
      %p226 = scmp.lt.s32.totalorder %s225, 1
      %s227 = scalar_select %p226, %s225, 1
      %s228 = smul.addr %s227, 8
      %s229 = scalar_lea.vmem %s3, %s228
      %s230 = sadd.s32 %s20, %s21
      %s231 = sadd.s32 %s20, %s21
      %p232 = scmp.lt.s32.totalorder %s231, 1
      %s233 = scalar_select %p232, %s231, 1
      %s234 = smul.addr %s233, 8
      %s235 = scalar_lea.vmem %s4, %s234
      %s236 = sadd.s32 %s20, %s21
      %v237 = vld [vmem:[%s224] sm:$0x7]
      %v238 = vld [vmem:[%s1] sm:$0xff]
      %v239 = vld [vmem:[%s2] sm:$0xff]
      %241 = vset.pattern.permute.xlu0 0
      %242 = vperm.xlu0 %241, %v239
      %v243 = vpop.permute.xlu0 %242
      %vm245 = vcmask 23552
      %v247 = vsel %vm245, %v238, 0
      %vm249 = vcmask 1042432
      %v251 = vsel %vm249, %v237, 0
      %253 = vmatpush.msra.mxu0 0.0
      %254 = vmatpush.msra.mxu0 0.0
      %255 = vmatpush.msra.mxu0 0.0
      %256 = vmatpush.msra.mxu0 0.0
      %257 = vmatpush.msra.mxu0 0.0
      %258 = vmatpush.msra.mxu0 0.0
      %259 = vmatpush.msra.mxu0 0.0
      %260 = vmatpush.msra.mxu0 0.0
      %261 = vmatpush.msra.mxu0 0.0
      %262 = vmatpush.msra.mxu0 0.0
      %263 = vmatpush.msra.mxu0 0.0
      %264 = vmatpush.msra.mxu0 0.0
      %265 = vmatpush.msra.mxu0 0.0
      %266 = vmatpush.msra.mxu0 0.0
      %267 = vmatpush.msra.mxu0 0.0
      %268 = vmatpush.msra.mxu0 %v251
      %269 = vmatmul.f32.gmra.mxu0 %v247
      %v270 = vpop.f32.mrf.mxu0
      %v271 = vadd.f32 %v243, %v270
      %272 = vdwg.mxu0
      %vm273 = vcmp.gt.f32.partialorder %v271, 0.0
      %v274 = vmul.f32 %v271, 0.1
      %v275 = vsel %vm273, %v271, %v274
      %vm276 = vcmask 130048
      %v277 = vsel %vm276, %v275, 0.0
      %278 = vadd.xlane.f32.xlu0 %v277
      %v279 = vpop.xlane.xlu0 %278
      %vm280 = vcmask 7168
      %281 = vst.msk [vmem:[%s235] sm:$0xff] %vm280, %v279
      %v283 = vsel %vm276, %v275, 0
      %285 = vmatpush.xpose.msra.mxu0 0.0
      %286 = vmatpush.xpose.msra.mxu0 0.0
      %287 = vmatpush.xpose.msra.mxu0 0.0
      %288 = vmatpush.xpose.msra.mxu0 0.0
      %289 = vmatpush.xpose.msra.mxu0 0.0
      %290 = vmatpush.xpose.msra.mxu0 0.0
      %291 = vmatpush.xpose.msra.mxu0 0.0
      %292 = vmatpush.xpose.msra.mxu0 0.0
      %293 = vmatpush.xpose.msra.mxu0 0.0
      %294 = vmatpush.xpose.msra.mxu0 0.0
      %295 = vmatpush.xpose.msra.mxu0 0.0
      %296 = vmatpush.xpose.msra.mxu0 0.0
      %297 = vmatpush.xpose.msra.mxu0 0.0
      %298 = vmatpush.xpose.msra.mxu0 0.0
      %299 = vmatpush.xpose.msra.mxu0 0.0
      %300 = vmatpush.xpose.msra.mxu0 %v283
      %301 = vmatmul.f32.gmra.mxu0 %v283
      %v302 = vpop.f32.mrf.mxu0
      %v303 = vadd.f32 0.0, %v302
      %304 = vdwg.mxu0
      %vm305 = vcmask 64512
      %306 = vst.msk [vmem:[%s229] sm:$0xff] %vm305, %v303
      %s307 = sadd.s32 %s20, %s21
      %p308 = scmp.lt.s32.totalorder %s307, 1
      %s309 = scalar_select %p308, %s307, 1
      %s310 = smul.addr %s309, 8
      %s311 = scalar_lea.vmem %s3, %s310
      %s312 = sadd.s32 %s20, %s21
      %p313 = scmp.lt.s32.totalorder %s312, 1
      %s314 = scalar_select %p313, %s312, 1
      %s315 = smul.addr %s314, 8
      %s316 = scalar_lea.vmem %s4, %s315
      // Predicated region
      $region33: #{input_block_forward.2} parent=31 // pred_check
        %p317 = pneg %p118
      $region34: #{input_block_forward.2} parent=31 // pred_check_branch
        %319 = sbr.rel (%p317) target = $region36
      $region35: #{input_block_forward.2} parent=31 // pred_region
        %s320 = sadd.s32 %s20, %s21
      $region36: #{input_block_forward.2} parent=31 // pred_fallthru
        _
      // Predicated region
      $region37: #{input_block_forward.2} parent=31 // pred_check
        %p321 = pneg %p146
      $region38: #{input_block_forward.2} parent=31 // pred_check_branch
        %323 = sbr.rel (%p321) target = $region40
      $region39: #{input_block_forward.2} parent=31 // pred_region
        %s324 = sadd.s32 %s20, %s21
      $region40: #{input_block_forward.2} parent=31 // pred_fallthru
        _
    $region32: #{input_block_forward.2} parent=5 // pred_fallthru
      _
    %p325 = scmp.le.s32.totalorder 2, %s11
    // Predicated region
    $region41: #{input_block_forward.2} parent=5 // pred_check
      %p326 = pneg %p325
    $region42: #{input_block_forward.2} parent=5 // pred_check_branch
      %328 = sbr.rel (%p326) target = $region44
    $region43: #{input_block_forward.2} parent=5 // pred_region
      %s329 = ssub.s32 %s11, 2
      // Predicated region
      $region45: #{input_block_forward.2} parent=43 // pred_check
        %p330 = pneg %p124
      $region46: #{input_block_forward.2} parent=43 // pred_check_branch
        %332 = sbr.rel (%p330) target = $region48
      $region47: #{input_block_forward.2} parent=43 // pred_region
        %s333 = sadd.s32 %s22, %s23
        %p334 = scmp.lt.s32.totalorder %s333, 1
        %s335 = scalar_select %p334, %s333, 1
        %s336 = smul.addr %s335, 8
        %s337 = scalar_lea.vmem %s3, %s336
      $region48: #{input_block_forward.2} parent=43 // pred_fallthru
        _
      // Predicated region
      $region49: #{input_block_forward.2} parent=43 // pred_check
        %p338 = pneg %p152
      $region50: #{input_block_forward.2} parent=43 // pred_check_branch
        %340 = sbr.rel (%p338) target = $region52
      $region51: #{input_block_forward.2} parent=43 // pred_region
        %s341 = sadd.s32 %s22, %s23
        %p342 = scmp.lt.s32.totalorder %s341, 1
        %s343 = scalar_select %p342, %s341, 1
        %s344 = smul.addr %s343, 8
        %s345 = scalar_lea.vmem %s4, %s344
      $region52: #{input_block_forward.2} parent=43 // pred_fallthru
        _
    $region44: #{input_block_forward.2} parent=5 // pred_fallthru
      _
  $region6: #{input_block_forward.2} parent=0 // loop_footer
    %s15 = sadd.s32 1, %s11
  $region7: #{input_block_forward.2} parent=0 // loop_footer_branch
    %10 = sbr.rel target = $region3
  $region8: #{input_block_forward.2} parent=0 // loop_exit
    _

// kernel: input_block_forward.3
$region0: #{input_block_forward.3}
  #allocation0 [shape = 'u32[]', space=smem, size = 0x4, offset = 0x4, fixed_abs, tag = 'smem constant byte address 0x4 - core index']
  #allocation1 [shape = 'u32[72,128]{1,0:T(1,128)}', space=vmem, size = 0x9000, scoped, tag = 'internal scratch']
  %s0 = inlined_call_operand.vmem [shape: f32[2,3,16], index: 0, kind: input, shape index: {}]
  %s1 = inlined_call_operand.vmem [shape: f32[8,3], index: 1, kind: input, shape index: {}]
  %s2 = inlined_call_operand.vmem [shape: f32[8,1], index: 2, kind: input, shape index: {}]
  %s3 = inlined_call_operand.vmem [shape: f32[8,8], index: 3, kind: input, shape index: {}]
  %s4 = inlined_call_operand.vmem [shape: f32[8,1], index: 4, kind: input, shape index: {}]
  %s5 = inlined_call_operand.vmem [shape: f32[2,8,16], index: 5, kind: output, shape index: {}]
  %s6 = sld [smem:[#allocation0]]
  $region53: #{input_block_forward.3} parent=0
    _
  %s8 = ssub.s32 1, %s6
  %s9 = scalar_select 0, %s8, %s6
  loop: start=0, step=1, limit=4
  $region2: #{input_block_forward.3} parent=0 // loop_pre_header
    _
  $region3: #{input_block_forward.3} parent=0 // loop_header
    %s11 = sphi 0, %s15
    %p12 = scmp.ge.s32.totalorder %s11, 4
    %s18 = sphi 0, %s30
    %s19 = sphi 0, %s26
    %s20 = sphi 0, %s18
    %s21 = sphi 0, %s19
    %s22 = sphi 0, %s20
    %s23 = sphi 0, %s21
    %s35 = sphi 0, %s37
    %s38 = sphi 0, %s35
    %s39 = sphi 0, %s38
    %s55 = sphi 0, %s39
    %s59 = sphi 0, %s59
    %s61 = sphi 0, %s59
    %s62 = sphi 0, %s61
    %s76 = sphi 0, %s62
    %s80 = sphi 0, %s80
    %s82 = sphi 0, %s80
    %s83 = sphi 0, %s82
    %s97 = sphi 0, %s83
    %s101 = sphi 0, %s101
    %s103 = sphi 0, %s101
    %s104 = sphi 0, %s103
    %s118 = sphi 0, %s104
    %s122 = sphi 0, %s122
    %s124 = sphi 0, %s122
    %s125 = sphi 0, %s124
    %s139 = sphi 0, %s125
    %s147 = sphi 0, %s149
    %s150 = sphi 0, %s147
    %s151 = sphi 0, %s150
    %s167 = sphi 0, %s151
  $region4: #{input_block_forward.3} parent=0 // loop_header_branch
    %14 = sbr.rel (%p12) target = $region8
  $region5: #{input_block_forward.3} parent=0 // loop_body
    %s16 = ssub.s32 %s11, 1
    %s17 = ssub.s32 %s11, 2
    %s24 = sadd.s32 1, %s19
    %p25 = scmp.ge.s32.totalorder %s24, 1
    %s26 = scalar_select %p25, 0, %s24
    %s27 = sadd.s32 1, %s18
    %s28 = scalar_select %p25, %s27, %s18
    %p29 = scmp.ge.s32.totalorder %s28, 2
    %s30 = scalar_select %p29, 0, %s28
    %s31 = ssub.s32 %s18, %s30
    %s32 = ssub.s32 %s19, %s26
    %s33 = sor.u32 %s31, %s32
    %p34 = scmp.eq.s32.totalorder %s33, 0
    %s36 = sadd.s32 %s35, 1
    %s37 = scalar_select %p34, %s35, %s36
    %p40 = pneg %p34
    %p41 = scmp.eq.s32.totalorder %s11, 1
    %p42 = por %p40, %p41
    %p43 = scmp.ne.s32.totalorder %s35, %s38
    %p44 = scmp.eq.s32.totalorder %s11, 0
    %p45 = por %p43, %p44
    %p46 = scmp.ne.s32.totalorder %s35, %s38
    %p47 = scmp.eq.s32.totalorder %s16, 1
    %p48 = por %p46, %p47
    %p49 = scmp.ne.s32.totalorder %s38, %s39
    %p50 = scmp.eq.s32.totalorder %s16, 0
    %p51 = por %p49, %p50
    %p52 = scmp.ne.s32.totalorder %s38, %s39
    %p53 = scmp.eq.s32.totalorder %s17, 1
    %p54 = por %p52, %p53
    %p56 = scmp.ne.s32.totalorder %s39, %s55
    %p57 = scmp.eq.s32.totalorder %s17, 0
    %p58 = por %p56, %p57
    %s60 = sadd.s32 %s59, 1
    %p63 = scmp.eq.s32.totalorder %s11, 1
    %p64 = scmp.ne.s32.totalorder %s59, %s61
    %p65 = scmp.eq.s32.totalorder %s11, 0
    %p66 = por %p64, %p65
    %p67 = scmp.ne.s32.totalorder %s59, %s61
    %p68 = scmp.eq.s32.totalorder %s16, 1
    %p69 = por %p67, %p68
    %p70 = scmp.ne.s32.totalorder %s61, %s62
    %p71 = scmp.eq.s32.totalorder %s16, 0
    %p72 = por %p70, %p71
    %p73 = scmp.ne.s32.totalorder %s61, %s62
    %p74 = scmp.eq.s32.totalorder %s17, 1
    %p75 = por %p73, %p74
    %p77 = scmp.ne.s32.totalorder %s62, %s76
    %p78 = scmp.eq.s32.totalorder %s17, 0
    %p79 = por %p77, %p78
    %s81 = sadd.s32 %s80, 1
    %p84 = scmp.eq.s32.totalorder %s11, 1
    %p85 = scmp.ne.s32.totalorder %s80, %s82
    %p86 = scmp.eq.s32.totalorder %s11, 0
    %p87 = por %p85, %p86
    %p88 = scmp.ne.s32.totalorder %s80, %s82
    %p89 = scmp.eq.s32.totalorder %s16, 1
    %p90 = por %p88, %p89
    %p91 = scmp.ne.s32.totalorder %s82, %s83
    %p92 = scmp.eq.s32.totalorder %s16, 0
    %p93 = por %p91, %p92
    %p94 = scmp.ne.s32.totalorder %s82, %s83
    %p95 = scmp.eq.s32.totalorder %s17, 1
    %p96 = por %p94, %p95
    %p98 = scmp.ne.s32.totalorder %s83, %s97
    %p99 = scmp.eq.s32.totalorder %s17, 0
    %p100 = por %p98, %p99
    %s102 = sadd.s32 %s101, 1
    %p105 = scmp.eq.s32.totalorder %s11, 1
    %p106 = scmp.ne.s32.totalorder %s101, %s103
    %p107 = scmp.eq.s32.totalorder %s11, 0
    %p108 = por %p106, %p107
    %p109 = scmp.ne.s32.totalorder %s101, %s103
    %p110 = scmp.eq.s32.totalorder %s16, 1
    %p111 = por %p109, %p110
    %p112 = scmp.ne.s32.totalorder %s103, %s104
    %p113 = scmp.eq.s32.totalorder %s16, 0
    %p114 = por %p112, %p113
    %p115 = scmp.ne.s32.totalorder %s103, %s104
    %p116 = scmp.eq.s32.totalorder %s17, 1
    %p117 = por %p115, %p116
    %p119 = scmp.ne.s32.totalorder %s104, %s118
    %p120 = scmp.eq.s32.totalorder %s17, 0
    %p121 = por %p119, %p120
    %s123 = sadd.s32 %s122, 1
    %p126 = scmp.eq.s32.totalorder %s11, 1
    %p127 = scmp.ne.s32.totalorder %s122, %s124
    %p128 = scmp.eq.s32.totalorder %s11, 0
    %p129 = por %p127, %p128
    %p130 = scmp.ne.s32.totalorder %s122, %s124
    %p131 = scmp.eq.s32.totalorder %s16, 1
    %p132 = por %p130, %p131
    %p133 = scmp.ne.s32.totalorder %s124, %s125
    %p134 = scmp.eq.s32.totalorder %s16, 0
    %p135 = por %p133, %p134
    %p136 = scmp.ne.s32.totalorder %s124, %s125
    %p137 = scmp.eq.s32.totalorder %s17, 1
    %p138 = por %p136, %p137
    %p140 = scmp.ne.s32.totalorder %s125, %s139
    %p141 = scmp.eq.s32.totalorder %s17, 0
    %p142 = por %p140, %p141
    %s143 = ssub.s32 %s18, %s30
    %s144 = ssub.s32 %s19, %s26
    %s145 = sor.u32 %s143, %s144
    %p146 = scmp.eq.s32.totalorder %s145, 0
    %s148 = sadd.s32 %s147, 1
    %s149 = scalar_select %p146, %s147, %s148
    %p152 = pneg %p146
    %p153 = scmp.eq.s32.totalorder %s11, 1
    %p154 = por %p152, %p153
    %p155 = scmp.ne.s32.totalorder %s147, %s150
    %p156 = scmp.eq.s32.totalorder %s11, 0
    %p157 = por %p155, %p156
    %p158 = scmp.ne.s32.totalorder %s147, %s150
    %p159 = scmp.eq.s32.totalorder %s16, 1
    %p160 = por %p158, %p159
    %p161 = scmp.ne.s32.totalorder %s150, %s151
    %p162 = scmp.eq.s32.totalorder %s16, 0
    %p163 = por %p161, %p162
    %p164 = scmp.ne.s32.totalorder %s150, %s151
    %p165 = scmp.eq.s32.totalorder %s17, 1
    %p166 = por %p164, %p165
    %p168 = scmp.ne.s32.totalorder %s151, %s167
    %p169 = scmp.eq.s32.totalorder %s17, 0
    %p170 = por %p168, %p169
    %p171 = scmp.le.s32.totalorder 1, %s11
    %p172 = scmp.lt.s32.totalorder %s11, 3
    %p173 = pnand %p171, %p172
    %p174 = pneg %p173
    // Predicated region
    $region9: #{input_block_forward.3} parent=5 // pred_check
      _
    $region10: #{input_block_forward.3} parent=5 // pred_check_branch
      %176 = sbr.rel (%p173) target = $region12
    $region11: #{input_block_forward.3} parent=5 // pred_region
      %s177 = ssub.s32 %s11, 1
      // Predicated region
      $region13: #{input_block_forward.3} parent=11 // pred_check
        %p178 = pneg %p72
      $region14: #{input_block_forward.3} parent=11 // pred_check_branch
        %180 = sbr.rel (%p178) target = $region16
      $region15: #{input_block_forward.3} parent=11 // pred_region
        _
      $region16: #{input_block_forward.3} parent=11 // pred_fallthru
        _
      // Predicated region
      $region17: #{input_block_forward.3} parent=11 // pred_check
        %p181 = pneg %p93
      $region18: #{input_block_forward.3} parent=11 // pred_check_branch
        %183 = sbr.rel (%p181) target = $region20
      $region19: #{input_block_forward.3} parent=11 // pred_region
        _
      $region20: #{input_block_forward.3} parent=11 // pred_fallthru
        _
      // Predicated region
      $region21: #{input_block_forward.3} parent=11 // pred_check
        %p184 = pneg %p114
      $region22: #{input_block_forward.3} parent=11 // pred_check_branch
        %186 = sbr.rel (%p184) target = $region24
      $region23: #{input_block_forward.3} parent=11 // pred_region
        _
      $region24: #{input_block_forward.3} parent=11 // pred_fallthru
        _
      // Predicated region
      $region25: #{input_block_forward.3} parent=11 // pred_check
        %p187 = pneg %p135
      $region26: #{input_block_forward.3} parent=11 // pred_check_branch
        %189 = sbr.rel (%p187) target = $region28
      $region27: #{input_block_forward.3} parent=11 // pred_region
        _
      $region28: #{input_block_forward.3} parent=11 // pred_fallthru
        _
    $region12: #{input_block_forward.3} parent=5 // pred_fallthru
      _
    %p190 = scmp.lt.s32.totalorder %s11, 2
    // Predicated region
    $region29: #{input_block_forward.3} parent=5 // pred_check
      %p191 = pneg %p190
    $region30: #{input_block_forward.3} parent=5 // pred_check_branch
      %193 = sbr.rel (%p191) target = $region32
    $region31: #{input_block_forward.3} parent=5 // pred_region
      // Predicated region
      $region33: #{input_block_forward.3} parent=31 // pred_check
        %p194 = pneg %p45
      $region34: #{input_block_forward.3} parent=31 // pred_check_branch
        %196 = sbr.rel (%p194) target = $region36
      $region35: #{input_block_forward.3} parent=31 // pred_region
        %p197 = scmp.lt.s32.totalorder %s18, 1
        %s198 = scalar_select %p197, %s18, 1
        %p199 = scmp.lt.s32.totalorder %s19, 0
        %s200 = scalar_select %p199, %s19, 0
        %s201 = sadd.s32 %s200, %s198
        %s202 = smul.addr %s201, 4
        %s203 = scalar_lea.vmem %s0, %s202
      $region36: #{input_block_forward.3} parent=31 // pred_fallthru
        _
    $region32: #{input_block_forward.3} parent=5 // pred_fallthru
      _
    %p204 = scmp.le.s32.totalorder 1, %s11
    %p205 = scmp.lt.s32.totalorder %s11, 3
    %p206 = pnand %p204, %p205
    %p207 = pneg %p206
    // Predicated region
    $region37: #{input_block_forward.3} parent=5 // pred_check
      _
    $region38: #{input_block_forward.3} parent=5 // pred_check_branch
      %209 = sbr.rel (%p206) target = $region40
    $region39: #{input_block_forward.3} parent=5 // pred_region
      %s210 = ssub.s32 %s11, 1
      %p211 = scmp.lt.s32.totalorder %s20, 1
      %s212 = scalar_select %p211, %s20, 1
      %p213 = scmp.lt.s32.totalorder %s21, 0
      %s214 = scalar_select %p213, %s21, 0
      %s215 = sadd.s32 %s214, %s212
      %s216 = smul.addr %s215, 4
      %s217 = scalar_lea.vmem %s0, %s216
      %p218 = pneg %p51
      %p219 = pneg %p48
      %p220 = pneg %p72
      %p221 = pneg %p69
      %p222 = pneg %p93
      %p223 = pneg %p90
      %p224 = pneg %p114
      %p225 = pneg %p111
      %p226 = pneg %p135
      %p227 = pneg %p132
      %p228 = pneg %p163
      %p229 = pneg %p160
      %p230 = scmp.lt.s32.totalorder %s20, 1
      %s231 = scalar_select %p230, %s20, 1
      %p232 = scmp.lt.s32.totalorder %s21, 0
      %s233 = scalar_select %p232, %s21, 0
      %s234 = sadd.s32 %s233, %s231
      %s235 = smul.addr %s234, 8
      %s236 = scalar_lea.vmem %s5, %s235
      %p237 = scmp.lt.s32.totalorder %s20, 1
      %s238 = scalar_select %p237, %s20, 1
      %p239 = scmp.lt.s32.totalorder %s21, 0
      %s240 = scalar_select %p239, %s21, 0
      %s241 = sadd.s32 %s240, %s238
      %s242 = smul.addr %s241, 4
      %s243 = scalar_lea.vmem %s0, %s242
      %p244 = scmp.lt.s32.totalorder %s20, 1
      %s245 = scalar_select %p244, %s20, 1
      %p246 = scmp.lt.s32.totalorder %s21, 0
      %s247 = scalar_select %p246, %s21, 0
      %s248 = sadd.s32 %s247, %s245
      %s249 = smul.addr %s248, 8
      %s250 = scalar_lea.vmem %s5, %s249
      %v251 = vld [vmem:[%s243] sm:$0x7]
      %v252 = vld [vmem:[%s1] sm:$0xff]
      %v253 = vld [vmem:[%s2] sm:$0xff]
      %255 = vset.pattern.permute.xlu0 0
      %256 = vperm.xlu0 %255, %v253
      %v257 = vpop.permute.xlu0 %256
      %vm259 = vcmask 23552
      %v261 = vsel %vm259, %v252, 0
      %vm263 = vcmask 1042432
      %v265 = vsel %vm263, %v251, 0
      %267 = vmatpush.msra.mxu0 0.0
      %268 = vmatpush.msra.mxu0 0.0
      %269 = vmatpush.msra.mxu0 0.0
      %270 = vmatpush.msra.mxu0 0.0
      %271 = vmatpush.msra.mxu0 0.0
      %272 = vmatpush.msra.mxu0 0.0
      %273 = vmatpush.msra.mxu0 0.0
      %274 = vmatpush.msra.mxu0 0.0
      %275 = vmatpush.msra.mxu0 0.0
      %276 = vmatpush.msra.mxu0 0.0
      %277 = vmatpush.msra.mxu0 0.0
      %278 = vmatpush.msra.mxu0 0.0
      %279 = vmatpush.msra.mxu0 0.0
      %280 = vmatpush.msra.mxu0 0.0
      %281 = vmatpush.msra.mxu0 0.0
      %282 = vmatpush.msra.mxu0 %v265
      %283 = vmatmul.f32.gmra.mxu0 %v261
      %v284 = vpop.f32.mrf.mxu0
      %v285 = vadd.f32 %v257, %v284
      %286 = vdwg.mxu0
      %vm287 = vcmp.gt.f32.partialorder %v285, 0.0
      %v288 = vmul.f32 %v285, 0.1
      %v289 = vsel %vm287, %v285, %v288
      %v290 = vld [vmem:[%s3] sm:$0xff]
      %v291 = vld [vmem:[%s4] sm:$0xff]
      %293 = vset.pattern.permute.xlu0 0
      %294 = vperm.xlu0 %293, %v291
      %v295 = vpop.permute.xlu0 %294
      %vm297 = vcmask 64512
      %v299 = vsel %vm297, %v290, 0
      %301 = vmatpush.msra.mxu0 0.0
      %302 = vmatpush.msra.mxu0 0.0
      %303 = vmatpush.msra.mxu0 0.0
      %304 = vmatpush.msra.mxu0 0.0
      %305 = vmatpush.msra.mxu0 0.0
      %306 = vmatpush.msra.mxu0 0.0
      %307 = vmatpush.msra.mxu0 0.0
      %308 = vmatpush.msra.mxu0 0.0
      %309 = vmatpush.msra.mxu0 0.0
      %310 = vmatpush.msra.mxu0 0.0
      %311 = vmatpush.msra.mxu0 0.0
      %312 = vmatpush.msra.mxu0 0.0
      %313 = vmatpush.msra.mxu0 0.0
      %314 = vmatpush.msra.mxu0 0.0
      %315 = vmatpush.msra.mxu0 0.0
      %316 = vmatpush.msra.mxu0 %v289
      %317 = vmatmul.f32.gmra.mxu0 %v299
      %v318 = vpop.f32.mrf.mxu0
      %v319 = vadd.f32 %v295, %v318
      %320 = vdwg.mxu0
      %vm321 = vcmp.gt.f32.partialorder %v319, 0.0
      %v322 = vmul.f32 %v319, 0.1
      %v323 = vsel %vm321, %v319, %v322
      %vm324 = vcmask 130048
      %325 = vst.msk [vmem:[%s250] sm:$0xff] %vm324, %v323
      %p326 = scmp.lt.s32.totalorder %s20, 1
      %s327 = scalar_select %p326, %s20, 1
      %p328 = scmp.lt.s32.totalorder %s21, 0
      %s329 = scalar_select %p328, %s21, 0
      %s330 = sadd.s32 %s329, %s327
      %s331 = smul.addr %s330, 8
      %s332 = scalar_lea.vmem %s5, %s331
      // Predicated region
      $region41: #{input_block_forward.3} parent=39 // pred_check
        %p333 = pneg %p160
      $region42: #{input_block_forward.3} parent=39 // pred_check_branch
        %335 = sbr.rel (%p333) target = $region44
      $region43: #{input_block_forward.3} parent=39 // pred_region
        _
      $region44: #{input_block_forward.3} parent=39 // pred_fallthru
        _
    $region40: #{input_block_forward.3} parent=5 // pred_fallthru
      _
    %p336 = scmp.le.s32.totalorder 2, %s11
    // Predicated region
    $region45: #{input_block_forward.3} parent=5 // pred_check
      %p337 = pneg %p336
    $region46: #{input_block_forward.3} parent=5 // pred_check_branch
      %339 = sbr.rel (%p337) target = $region48
    $region47: #{input_block_forward.3} parent=5 // pred_region
      %s340 = ssub.s32 %s11, 2
      // Predicated region
      $region49: #{input_block_forward.3} parent=47 // pred_check
        %p341 = pneg %p166
      $region50: #{input_block_forward.3} parent=47 // pred_check_branch
        %343 = sbr.rel (%p341) target = $region52
      $region51: #{input_block_forward.3} parent=47 // pred_region
        %p344 = scmp.lt.s32.totalorder %s22, 1
        %s345 = scalar_select %p344, %s22, 1
        %p346 = scmp.lt.s32.totalorder %s23, 0
        %s347 = scalar_select %p346, %s23, 0
        %s348 = sadd.s32 %s347, %s345
        %s349 = smul.addr %s348, 8
        %s350 = scalar_lea.vmem %s5, %s349
      $region52: #{input_block_forward.3} parent=47 // pred_fallthru
        _
    $region48: #{input_block_forward.3} parent=5 // pred_fallthru
      _
  $region6: #{input_block_forward.3} parent=0 // loop_footer
    %s15 = sadd.s32 1, %s11
  $region7: #{input_block_forward.3} parent=0 // loop_footer_branch
    %10 = sbr.rel target = $region3
  $region8: #{input_block_forward.3} parent=0 // loop_exit
    _

</llo_original>
